<compile_context>
chip_gen: v6e
topology: v6e:2x2x1
jax: 0.10.0
libtpu: 0.0.40
codegen_flags: <defaults>
</compile_context>

<pallas_src>
import math

import jax
import jax.numpy as jnp
from jax.experimental import pallas as pl
from jax.experimental.pallas import tpu as pltpu


def _round_up(x, m):
    return (x + m - 1) // m * m


# ----------------------------------------------------------------------------
# Pallas kernel: out = X @ W + pos_bias   (positional term & linear bias folded)
# ----------------------------------------------------------------------------
def encoder_head_kernel(x_ref, w_ref, pb_ref, out_ref):
    # x_ref  : (tile_c, HW)     bf16  one batch's channel tile (batch dim squeezed)
    # w_ref  : (HW, E_pad)      bf16  Linear weight (pre-transposed), grid-invariant
    # pb_ref : (tile_c, E_pad)  f32   pos @ W^T + bias, batch-invariant
    # out_ref: (tile_c, E_pad)
    acc = jnp.dot(x_ref[...], w_ref[...], preferred_element_type=jnp.float32)
    out_ref[...] = (acc + pb_ref[...]).astype(out_ref.dtype)


def encoder_head(feats_flat, pos_bias, w_t, out_dtype=jnp.float32):
    """feats_flat: [B, C, HW] (ideally already bf16), pos_bias: [C, E] f32,
    w_t: [HW, E] f32.  Returns [B, C, E] in out_dtype."""
    B, C, HW = feats_flat.shape
    E = w_t.shape[1]

    # Lane padding for the weight/output N dim only.  256-multiples feed the
    # 256-wide MXU of v6e/v7x when E is large; 128 otherwise (optimal on v5e).
    e_align = 256 if E >= 256 else 128
    e_pad = _round_up(E, e_align)

    # Channel tiling: biggest sublane-aligned tile that divides C (512-1024 row
    # tiles reach ~85% of the HBM roofline), while keeping >= 2 grid steps so
    # both v7x TensorCores get work.
    if C % 8 == 0:
        tile_c = C
        for cand in (1024, 512, 256, 128, 64, 32, 16, 8):
            if cand <= C and C % cand == 0:
                tile_c = cand
                break
        while B * (C // tile_c) < 2 and tile_c % 16 == 0:
            tile_c //= 2
    else:
        tile_c = C  # full-extent channel block (allowed when == array dim)

    # No padding / extra HBM pass over X: the bf16 cast is a no-op when the
    # backbone already emits bf16, and K (=HW) is a full-extent block.
    x = feats_flat.astype(jnp.bfloat16)
    w_p = jnp.pad(w_t, ((0, 0), (0, e_pad - E))).astype(jnp.bfloat16)
    pb = jnp.pad(pos_bias, ((0, 0), (0, e_pad - E))).astype(jnp.float32)

    out_itemsize = jnp.dtype(out_dtype).itemsize
    vmem_need = (2 * tile_c * HW * 2        # X tile, double-buffered bf16
                 + 2 * HW * e_pad * 2       # W (constant index map -> DMA'd once)
                 + 2 * tile_c * e_pad * 4   # pos-bias tile, f32
                 + 2 * tile_c * e_pad * out_itemsize)
    # Explicit budget (v5e default scoped VMEM is only 16 MiB); capped at 56 MiB
    # so it also fits v7x's 64 MiB physical VMEM.
    vmem_limit = int(min(max(2 * vmem_need, 32 * 1024 * 1024), 56 * 1024 * 1024))

    # TODO(synk): if HW grows into the tens of thousands, add a K grid axis
    # marked "arbitrary" with a VMEM f32 accumulator instead of shrinking tile_c.
    out = pl.pallas_call(
        encoder_head_kernel,
        out_shape=jax.ShapeDtypeStruct((B, C, e_pad), out_dtype),
        grid=(B, C // tile_c),
        in_specs=[
            pl.BlockSpec((None, tile_c, HW), lambda b, c: (b, c, 0)),
            # Grid-invariant weight: constant index map, fetched once.
            # (pipeline_mode=pl.Buffered(1) could drop its 2nd buffer for extra
            #  v7x VMEM headroom once large K tiles are in play.)
            pl.BlockSpec((HW, e_pad), lambda b, c: (0, 0)),
            # Batch-invariant positional bias: indexed by the C tile only.
            pl.BlockSpec((tile_c, e_pad), lambda b, c: (c, 0)),
        ],
        out_specs=pl.BlockSpec((None, tile_c, e_pad), lambda b, c: (b, c, 0)),
        compiler_params=pltpu.CompilerParams(
            dimension_semantics=("parallel", "parallel"),
            vmem_limit_bytes=vmem_limit,
        ),
    )(x, w_p, pb)
    return out[:, :, :E]


# ----------------------------------------------------------------------------
# PositionalEncoding.generate  (mask is all-False in the forward pass, so the
# encoding only depends on the feature-map shape; computed once in plain JAX).
# ----------------------------------------------------------------------------
def positional_encoding(C, H, W, eps=1e-6, temperature=10000.0):
    assert C % 4 == 0, "PositionalEncoding requires C divisible by 4"
    num_pos = C // 2
    dim_t = jnp.arange(0, num_pos, 2, dtype=jnp.float32)
    dim_t = jnp.repeat(dim_t, 2)                     # repeat_interleave(2)
    dim_t = dim_t / num_pos
    dim_t = temperature ** dim_t                     # (num_pos,)

    ones = jnp.ones((H, W), jnp.float32)             # ~mask (all-False) cumsum
    y_emb = jnp.cumsum(ones, axis=0)
    x_emb = jnp.cumsum(ones, axis=1)
    y_emb = 2.0 * math.pi * y_emb / (jnp.max(y_emb, axis=0, keepdims=True) + eps)
    x_emb = 2.0 * math.pi * x_emb / (jnp.max(x_emb, axis=1, keepdims=True) + eps)

    y_enc = y_emb[None] / dim_t[:, None, None]       # (num_pos, H, W)
    x_enc = x_emb[None] / dim_t[:, None, None]
    even = (jnp.arange(num_pos) % 2 == 0)[:, None, None]
    y_enc = jnp.where(even, jnp.sin(y_enc), jnp.cos(y_enc))
    x_enc = jnp.where(even, jnp.sin(x_enc), jnp.cos(x_enc))
    return jnp.concatenate([y_enc, x_enc], axis=0)   # (C, H, W): y first, then x


# ----------------------------------------------------------------------------
# Backbone = ResNet stem + layer1 (3 bottleneck blocks), reduced width,
# deterministic synthetic weights.  Frozen inference-mode BatchNorms are folded
# into the conv weights at construction time and the backbone runs in bf16.
# TODO(synk): frozen, pretrained ResNet152 backbone convolutions are left in
#             plain JAX (lax.conv) rather than hand-written Pallas conv kernels.
# ----------------------------------------------------------------------------
def conv2d(x, w, b=None, stride=1, padding=0):
    y = jax.lax.conv_general_dilated(
        x, w, window_strides=(stride, stride),
        padding=[(padding, padding), (padding, padding)],
        dimension_numbers=("NCHW", "OIHW", "NCHW"),
        preferred_element_type=jnp.float32)
    if b is not None:
        y = y + b[None, :, None, None]
    return y


def maxpool(x, k=3, s=2, p=1):
    return jax.lax.reduce_window(
        x, jnp.array(-jnp.inf, x.dtype), jax.lax.max,
        (1, 1, k, k), (1, 1, s, s),
        [(0, 0), (0, 0), (p, p), (p, p)])


def make_conv(key, cout, cin, kh, kw):
    fan_in = cin * kh * kw
    return jax.random.normal(key, (cout, cin, kh, kw), jnp.float32) * (2.0 / fan_in) ** 0.5


def make_bn(key, c):
    k1, k2 = jax.random.split(key)
    gamma = 1.0 + 0.1 * jax.random.normal(k1, (c,), jnp.float32)
    beta = 0.1 * jax.random.normal(k2, (c,), jnp.float32)
    return gamma, beta, jnp.zeros((c,), jnp.float32), jnp.ones((c,), jnp.float32)


def make_folded_conv_bn(key, cout, cin, kh, kw, eps=1e-5):
    """Conv + frozen inference-mode BatchNorm folded into (bf16 weight, f32 bias)."""
    kw_, kb_ = jax.random.split(key)
    w = make_conv(kw_, cout, cin, kh, kw)
    gamma, beta, mean, var = make_bn(kb_, cout)
    scale = gamma * jax.lax.rsqrt(var + eps)
    w_folded = w * scale[:, None, None, None]
    b_folded = beta - mean * scale
    return w_folded.astype(jnp.bfloat16), b_folded.astype(jnp.float32)


def make_bottleneck(key, cin, planes, downsample):
    ks = jax.random.split(key, 4)
    p = dict(
        conv1=make_folded_conv_bn(ks[0], planes, cin, 1, 1),
        conv2=make_folded_conv_bn(ks[1], planes, planes, 3, 3),
        conv3=make_folded_conv_bn(ks[2], planes * 4, planes, 1, 1),
    )
    if downsample:
        p["down"] = make_folded_conv_bn(ks[3], planes * 4, cin, 1, 1)
    return p


def bottleneck(x, p):
    # x: bf16 [B, Cin, H, W]; convs accumulate in f32, activations re-emitted bf16.
    out = jax.nn.relu(conv2d(x, *p["conv1"]))
    out = jax.nn.relu(conv2d(out.astype(jnp.bfloat16), *p["conv2"], padding=1))
    out = conv2d(out.astype(jnp.bfloat16), *p["conv3"])
    identity = conv2d(x, *p["down"]) if "down" in p else x.astype(jnp.float32)
    return jax.nn.relu(out + identity).astype(jnp.bfloat16)


def make_backbone(key, width):
    ks = jax.random.split(key, 4)
    return dict(
        stem=make_folded_conv_bn(ks[0], width, 3, 7, 7),
        block1=make_bottleneck(ks[1], width, width, True),
        block2=make_bottleneck(ks[2], width * 4, width, False),
        block3=make_bottleneck(ks[3], width * 4, width, False),
    )


def backbone_fwd(imgs, p):
    x = jax.nn.relu(conv2d(imgs.astype(jnp.bfloat16), *p["stem"], stride=2, padding=3))
    x = maxpool(x.astype(jnp.bfloat16))      # spatial /4 overall
    x = bottleneck(x, p["block1"])
    x = bottleneck(x, p["block2"])
    x = bottleneck(x, p["block3"])
    return x                                 # bf16 [B, 4*width, S/4, S/4]


# ----------------------------------------------------------------------------
# Full CNNEncoder4 forward
# ----------------------------------------------------------------------------
def cnn_encoder4_forward(imgs, params):
    feats = backbone_fwd(imgs, params["backbone"])            # [B, C, H, W] bf16
    B, C, H, W = feats.shape
    pos = positional_encoding(C, H, W)                        # [C, H, W] batch-invariant
    w_t = params["linear_w_t"]                                # [HW, E], pre-transposed once
    # Fold the positional term into the bias:
    #   (feat + pos) @ W^T + b == feat @ W^T + (pos @ W^T + b)
    pos_bias = jnp.dot(pos.reshape(C, H * W), w_t,
                       precision=jax.lax.Precision.HIGHEST) + params["linear_b"]  # [C, E]
    return encoder_head(feats.reshape(B, C, H * W), pos_bias, w_t)


if __name__ == "__main__":
    key = jax.random.PRNGKey(0)
    k_img, k_bb, k_lw, k_lb = jax.random.split(key, 4)

    # Small, self-consistent shapes: 32x32 images -> backbone features
    # [B, 32, 8, 8] -> flatten HW = (32/4)^2 = 64 = Linear in_features
    # (mirrors int((224/4)**2) = 3136 in the real module).
    B, Cin, S = 2, 3, 32
    width = 8                       # feature channels C = 4*width = 32
    dim_embedding = 32
    HW = (S // 4) ** 2              # 64

    imgs = jax.random.normal(k_img, (B, Cin, S, S), jnp.float32)
    linear_w = jax.random.uniform(k_lw, (dim_embedding, HW), jnp.float32,
                                  -1.0 / math.sqrt(HW), 1.0 / math.sqrt(HW))
    params = dict(
        backbone=make_backbone(k_bb, width),
        linear_w=linear_w,
        linear_w_t=linear_w.T,      # pre-transposed once at construction time
        linear_b=jax.random.uniform(k_lb, (dim_embedding,), jnp.float32,
                                    -1.0 / math.sqrt(HW), 1.0 / math.sqrt(HW)),
    )

    out = jax.block_until_ready(cnn_encoder4_forward(imgs, params))
    assert out.shape == (B, 4 * width, dim_embedding), out.shape

    # ---- references ---------------------------------------------------------
    feats = backbone_fwd(imgs, params["backbone"])            # bf16 (same path)
    _, C, H, W = feats.shape
    feats_f32 = feats.astype(jnp.float32).reshape(B, C, H * W)
    pos = positional_encoding(C, H, W)

    # (a) module semantics on the same features (loose: kernel uses a bf16 weight
    #     and the folded positional bias).
    ref = jnp.einsum("bch,eh->bce",
                     feats_f32 + pos.reshape(C, H * W)[None],
                     params["linear_w"],
                     precision=jax.lax.Precision.HIGHEST) + params["linear_b"]
    assert jnp.allclose(out, ref, atol=1e-1, rtol=1e-1), "mismatch vs f32 reference"

    # (b) bf16-quantized-weight reference (tight: validates fold/tiling/padding).
    pos_bias = jnp.dot(pos.reshape(C, H * W), params["linear_w_t"],
                       precision=jax.lax.Precision.HIGHEST) + params["linear_b"]
    w_q = params["linear_w_t"].astype(jnp.bfloat16).astype(jnp.float32)
    ref_q = jnp.einsum("bck,ke->bce", feats_f32, w_q,
                       precision=jax.lax.Precision.HIGHEST) + pos_bias[None]
    assert jnp.allclose(out, ref_q, atol=1e-2, rtol=1e-2), "mismatch vs bf16 reference"

    print("KERNEL_OK")
</pallas_src>

<mosaic_0001>
module attributes {stable_mosaic.version = 11 : i64} {
  func.func @encoder_head_kernel(%arg0: i32, %arg1: i32, %arg2: memref<1x32x64xbf16, #tpu.memory_space<vmem>>, %arg3: memref<64x128xbf16, #tpu.memory_space<vmem>>, %arg4: memref<32x128xf32, #tpu.memory_space<vmem>>, %arg5: memref<1x32x128xf32, #tpu.memory_space<vmem>>) attributes {dimension_semantics = [#tpu.dimension_semantics<parallel>, #tpu.dimension_semantics<parallel>], iteration_bounds = array<i64: 2, 1>, scalar_prefetch = 0 : i64, scratch_operands = 0 : i64, tpu.core_type = #tpu.core_type<tc>, window_params = [{transform_indices = @transform_0, window_bounds = array<i64: 1, 32, 64>}, {pipeline_mode = #tpu.pipeline_mode<synchronous>, transform_indices = @transform_1, window_bounds = array<i64: 64, 128>}, {transform_indices = @transform_2, window_bounds = array<i64: 32, 128>}, {transform_indices = @transform_3, window_bounds = array<i64: 1, 32, 128>}]} {
    %c0 = arith.constant 0 : index
    %c0_0 = arith.constant 0 : index
    %c0_1 = arith.constant 0 : index
    %0 = vector.load %arg2[%c0, %c0_0, %c0_1] : memref<1x32x64xbf16, #tpu.memory_space<vmem>>, vector<1x32x64xbf16>
    %1 = vector.shape_cast %0 : vector<1x32x64xbf16> to vector<32x64xbf16>
    %c0_2 = arith.constant 0 : index
    %c0_3 = arith.constant 0 : index
    %2 = vector.load %arg3[%c0_2, %c0_3] : memref<64x128xbf16, #tpu.memory_space<vmem>>, vector<64x128xbf16>
    %cst = arith.constant dense<0.000000e+00> : vector<32x128xf32>
    %3 = tpu.matmul %1, %2, %cst {dimension_numbers = #tpu.dot_dimension_numbers<[1], [0], [0], [1], [0, 0, 1, 1], [], []>} : vector<32x64xbf16>, vector<64x128xbf16>, vector<32x128xf32> -> vector<32x128xf32>
    %c0_4 = arith.constant 0 : index
    %c0_5 = arith.constant 0 : index
    %4 = vector.load %arg4[%c0_4, %c0_5] : memref<32x128xf32, #tpu.memory_space<vmem>>, vector<32x128xf32>
    %5 = arith.addf %3, %4 : vector<32x128xf32>
    %c0_6 = arith.constant 0 : index
    %c0_7 = arith.constant 0 : index
    %c0_8 = arith.constant 0 : index
    %6 = vector.load %arg5[%c0_6, %c0_7, %c0_8] : memref<1x32x128xf32, #tpu.memory_space<vmem>>, vector<1x32x128xf32>
    %7 = vector.shape_cast %6 : vector<1x32x128xf32> to vector<32x128xf32>
    %8 = vector.shape_cast %5 : vector<32x128xf32> to vector<1x32x128xf32>
    tpu.vector_store %arg5[%c0_6, %c0_7, %c0_8], %8 {strides = array<i32>} : memref<1x32x128xf32, #tpu.memory_space<vmem>>, vector<1x32x128xf32>,
    return
  }
  func.func @transform_0(%arg0: i32, %arg1: i32) -> (i32, i32, i32) {
    %c0_i32 = arith.constant 0 : i32
    %c0_i32_0 = arith.constant 0 : i32
    return %arg0, %arg1, %c0_i32 : i32, i32, i32
  }
  func.func @transform_1(%arg0: i32, %arg1: i32) -> (i32, i32) {
    %c0_i32 = arith.constant 0 : i32
    %c0_i32_0 = arith.constant 0 : i32
    %c0_i32_1 = arith.constant 0 : i32
    return %c0_i32, %c0_i32_0 : i32, i32
  }
  func.func @transform_2(%arg0: i32, %arg1: i32) -> (i32, i32) {
    %c0_i32 = arith.constant 0 : i32
    %c0_i32_0 = arith.constant 0 : i32
    return %arg1, %c0_i32 : i32, i32
  }
  func.func @transform_3(%arg0: i32, %arg1: i32) -> (i32, i32, i32) {
    %c0_i32 = arith.constant 0 : i32
    %c0_i32_0 = arith.constant 0 : i32
    return %arg0, %arg1, %c0_i32 : i32, i32, i32
  }
}

</mosaic_0001>

<llo_original>
// kernel: tpu_custom_call.1
$region0: #{tpu_custom_call.1}
  #allocation0 [shape = 'u32[]', space=smem, size = 0x4, offset = 0x4, fixed_abs, tag = 'smem constant byte address 0x4 - core index']
  #allocation1 [shape = 'u32[144,128]{1,0:T(1,128)}', space=vmem, size = 0x12000, scoped, tag = 'internal scratch']
  %s0 = inlined_call_operand.hbm [shape: bf16[2,32,64], index: 0, kind: input, shape index: {}]
  %s1 = inlined_call_operand.hbm [shape: bf16[64,128], index: 1, kind: input, shape index: {}]
  %s2 = inlined_call_operand.hbm [shape: f32[32,128], index: 2, kind: input, shape index: {}]
  %s3 = inlined_call_operand.hbm [shape: f32[2,32,128], index: 3, kind: output, shape index: {}]
  %s4 = sld [smem:[#allocation0]]
  $region57: #{tpu_custom_call.1} parent=0
    _
  %s6 = ssub.s32 1, %s4
  %s7 = scalar_select 0, %s6, %s4
  $region1: #{tpu_custom_call.1} parent=0
    #allocation2 [shape = 'u8[16384]{0}', space=vmem, size = 0x4000, scoped, tag = 'input window, operand 0']
    #allocation3 [shape = 's32[2]{0}', space=sflag, size = 0x8, scoped, tag = 'scoped memory for tpu_custom_call.1']
    #allocation4 [shape = 's32[2]{0}', space=sflag, size = 0x8, scoped, tag = 'scoped memory for tpu_custom_call.1']
    #allocation5 [shape = 'u8[16384]{0}', space=vmem, size = 0x4000, scoped, tag = 'input window, operand 1, single buffered']
    #allocation6 [shape = 's32[1]{0}', space=sflag, size = 0x4, scoped, tag = 'scoped memory for tpu_custom_call.1']
    #allocation7 [shape = 'u8[16384]{0}', space=vmem, size = 0x4000, scoped, tag = 'input window, operand 2, single buffered']
    #allocation8 [shape = 'u8[32768]{0}', space=vmem, size = 0x8000, scoped, tag = 'output window, operand 0']
    %8 = vsyncpa [#allocation3], 0
    %s9 = scalar_lea.sflag [#allocation3], 1
    %10 = vsyncpa %s9, 0
    %11 = vsyncpa [#allocation6], 0
    %12 = vsyncpa [#allocation4], 0
    %s13 = scalar_lea.sflag [#allocation4], 1
    %14 = vsyncpa %s13, 0
    loop: start=0, step=1, limit=4
    $region2: #{tpu_custom_call.1} parent=1 // loop_pre_header
      _
    $region3: #{tpu_custom_call.1} parent=1 // loop_header
      %s16 = sphi 0, %s20
      %p17 = scmp.ge.s32.totalorder %s16, 4
      %s23 = sphi 0, %s35
      %s24 = sphi 0, %s31
      %s25 = sphi 0, %s23
      %s26 = sphi 0, %s24
      %s27 = sphi 0, %s25
      %s28 = sphi 0, %s26
      %s40 = sphi 0, %s42
      %s43 = sphi 0, %s40
      %s44 = sphi 0, %s43
      %s60 = sphi 0, %s44
      %s64 = sphi 0, %s64
      %s66 = sphi 0, %s64
      %s67 = sphi 0, %s66
      %s81 = sphi 0, %s67
      %s87 = sphi 0, %s89
      %s90 = sphi 0, %s87
      %s91 = sphi 0, %s90
      %s107 = sphi 0, %s91
      %s115 = sphi 0, %s117
      %s118 = sphi 0, %s115
      %s119 = sphi 0, %s118
      %s135 = sphi 0, %s119
    $region4: #{tpu_custom_call.1} parent=1 // loop_header_branch
      %19 = sbr.rel (%p17) target = $region8
    $region5: #{tpu_custom_call.1} parent=1 // loop_body
      %s21 = ssub.s32 %s16, 1
      %s22 = ssub.s32 %s16, 2
      %s29 = sadd.s32 1, %s24
      %p30 = scmp.ge.s32.totalorder %s29, 1
      %s31 = scalar_select %p30, 0, %s29
      %s32 = sadd.s32 1, %s23
      %s33 = scalar_select %p30, %s32, %s23
      %p34 = scmp.ge.s32.totalorder %s33, 2
      %s35 = scalar_select %p34, 0, %s33
      %s36 = ssub.s32 %s23, %s35
      %s37 = ssub.s32 %s24, %s31
      %s38 = sor.u32 %s36, %s37
      %p39 = scmp.eq.s32.totalorder %s38, 0
      %s41 = sadd.s32 %s40, 1
      %s42 = scalar_select %p39, %s40, %s41
      %p45 = pneg %p39
      %p46 = scmp.eq.s32.totalorder %s16, 1
      %p47 = por %p45, %p46
      %p48 = scmp.ne.s32.totalorder %s40, %s43
      %p49 = scmp.eq.s32.totalorder %s16, 0
      %p50 = por %p48, %p49
      %p51 = scmp.ne.s32.totalorder %s40, %s43
      %p52 = scmp.eq.s32.totalorder %s21, 1
      %p53 = por %p51, %p52
      %p54 = scmp.ne.s32.totalorder %s43, %s44
      %p55 = scmp.eq.s32.totalorder %s21, 0
      %p56 = por %p54, %p55
      %p57 = scmp.ne.s32.totalorder %s43, %s44
      %p58 = scmp.eq.s32.totalorder %s22, 1
      %p59 = por %p57, %p58
      %p61 = scmp.ne.s32.totalorder %s44, %s60
      %p62 = scmp.eq.s32.totalorder %s22, 0
      %p63 = por %p61, %p62
      %s65 = sadd.s32 %s64, 1
      %p68 = scmp.eq.s32.totalorder %s16, 1
      %p69 = scmp.ne.s32.totalorder %s64, %s66
      %p70 = scmp.eq.s32.totalorder %s16, 0
      %p71 = por %p69, %p70
      %p72 = scmp.ne.s32.totalorder %s64, %s66
      %p73 = scmp.eq.s32.totalorder %s21, 1
      %p74 = por %p72, %p73
      %p75 = scmp.ne.s32.totalorder %s66, %s67
      %p76 = scmp.eq.s32.totalorder %s21, 0
      %p77 = por %p75, %p76
      %p78 = scmp.ne.s32.totalorder %s66, %s67
      %p79 = scmp.eq.s32.totalorder %s22, 1
      %p80 = por %p78, %p79
      %p82 = scmp.ne.s32.totalorder %s67, %s81
      %p83 = scmp.eq.s32.totalorder %s22, 0
      %p84 = por %p82, %p83
      %s85 = ssub.s32 %s24, %s31
      %p86 = scmp.eq.s32.totalorder %s85, 0
      %s88 = sadd.s32 %s87, 1
      %s89 = scalar_select %p86, %s87, %s88
      %p92 = pneg %p86
      %p93 = scmp.eq.s32.totalorder %s16, 1
      %p94 = por %p92, %p93
      %p95 = scmp.ne.s32.totalorder %s87, %s90
      %p96 = scmp.eq.s32.totalorder %s16, 0
      %p97 = por %p95, %p96
      %p98 = scmp.ne.s32.totalorder %s87, %s90
      %p99 = scmp.eq.s32.totalorder %s21, 1
      %p100 = por %p98, %p99
      %p101 = scmp.ne.s32.totalorder %s90, %s91
      %p102 = scmp.eq.s32.totalorder %s21, 0
      %p103 = por %p101, %p102
      %p104 = scmp.ne.s32.totalorder %s90, %s91
      %p105 = scmp.eq.s32.totalorder %s22, 1
      %p106 = por %p104, %p105
      %p108 = scmp.ne.s32.totalorder %s91, %s107
      %p109 = scmp.eq.s32.totalorder %s22, 0
      %p110 = por %p108, %p109
      %s111 = ssub.s32 %s23, %s35
      %s112 = ssub.s32 %s24, %s31
      %s113 = sor.u32 %s111, %s112
      %p114 = scmp.eq.s32.totalorder %s113, 0
      %s116 = sadd.s32 %s115, 1
      %s117 = scalar_select %p114, %s115, %s116
      %p120 = pneg %p114
      %p121 = scmp.eq.s32.totalorder %s16, 1
      %p122 = por %p120, %p121
      %p123 = scmp.ne.s32.totalorder %s115, %s118
      %p124 = scmp.eq.s32.totalorder %s16, 0
      %p125 = por %p123, %p124
      %p126 = scmp.ne.s32.totalorder %s115, %s118
      %p127 = scmp.eq.s32.totalorder %s21, 1
      %p128 = por %p126, %p127
      %p129 = scmp.ne.s32.totalorder %s118, %s119
      %p130 = scmp.eq.s32.totalorder %s21, 0
      %p131 = por %p129, %p130
      %p132 = scmp.ne.s32.totalorder %s118, %s119
      %p133 = scmp.eq.s32.totalorder %s22, 1
      %p134 = por %p132, %p133
      %p136 = scmp.ne.s32.totalorder %s119, %s135
      %p137 = scmp.eq.s32.totalorder %s22, 0
      %p138 = por %p136, %p137
      %p139 = scmp.le.s32.totalorder 1, %s16
      %p140 = scmp.lt.s32.totalorder %s16, 3
      %p141 = pnand %p139, %p140
      %p142 = pneg %p141
      // Predicated region
      $region9: #{tpu_custom_call.1} parent=5 // pred_check
        _
      $region10: #{tpu_custom_call.1} parent=5 // pred_check_branch
        %144 = sbr.rel (%p141) target = $region12
      $region11: #{tpu_custom_call.1} parent=5 // pred_region
        %s145 = ssub.s32 %s16, 1
        // Predicated region
        $region13: #{tpu_custom_call.1} parent=11 // pred_check
          %p146 = pneg %p77
        $region14: #{tpu_custom_call.1} parent=11 // pred_check_branch
          %148 = sbr.rel (%p146) target = $region16
        $region15: #{tpu_custom_call.1} parent=11 // pred_region
          %s150 = ssub.s32 512, 512
          %151 = vsyncadd [#allocation6], %s150
          %s152 = sshll.u32 [#allocation5], 4
          %s153 = int_to_ptr.vmem [resolvable:$true] %s152
          %158 = dma.hbm_to_vmem [thread:$0]  %s1, 512, %s153, [#allocation6], 64, 64, 4
        $region16: #{tpu_custom_call.1} parent=11 // pred_fallthru
          _
        // Predicated region
        $region17: #{tpu_custom_call.1} parent=11 // pred_check
          %p159 = pneg %p103
        $region18: #{tpu_custom_call.1} parent=11 // pred_check_branch
          %161 = sbr.rel (%p159) target = $region20
        $region19: #{tpu_custom_call.1} parent=11 // pred_region
          %s162 = smul.u32 4, %s26
          %s164 = ssub.s32 512, 512
          %165 = vsyncadd [#allocation6], %s164
          %s166 = smul.addr %s162, 128
          %s167 = scalar_lea.hbm %s2, %s166
          %s168 = sshll.u32 [#allocation7], 4
          %s169 = int_to_ptr.vmem [resolvable:$true] %s168
          %174 = dma.hbm_to_vmem [thread:$0]  %s167, 512, %s169, [#allocation6], 128, 128, 8
        $region20: #{tpu_custom_call.1} parent=11 // pred_fallthru
          _
      $region12: #{tpu_custom_call.1} parent=5 // pred_fallthru
        _
      %p175 = scmp.lt.s32.totalorder %s16, 2
      // Predicated region
      $region21: #{tpu_custom_call.1} parent=5 // pred_check
        %p176 = pneg %p175
      $region22: #{tpu_custom_call.1} parent=5 // pred_check_branch
        %178 = sbr.rel (%p176) target = $region24
      $region23: #{tpu_custom_call.1} parent=5 // pred_region
        // Predicated region
        $region25: #{tpu_custom_call.1} parent=23 // pred_check
          %p179 = pneg %p50
        $region26: #{tpu_custom_call.1} parent=23 // pred_check_branch
          %181 = sbr.rel (%p179) target = $region28
        $region27: #{tpu_custom_call.1} parent=23 // pred_region
          %s182 = sand.u32 %s40, 1
          %s183 = scalar_lea.sflag [#allocation3], %s182
          %s184 = sand.u32 %s40, 1
          %s185 = smul.addr %s184, 16
          %s186 = scalar_lea.vmem [#allocation2], %s185
          %s187 = smul.u32 4, %s24
          %s189 = ssub.s32 256, 256
          %190 = vsyncadd %s183, %s189
          %s191 = smul.addr %s23, 4
          %s192 = sadd.s32 %s187, %s191
          %s193 = smul.addr %s192, 64
          %s194 = scalar_lea.hbm %s0, %s193
          %s195 = sshll.u32 %s186, 4
          %s196 = int_to_ptr.vmem [resolvable:$true] %s195
          %201 = dma.hbm_to_vmem [thread:$0]  %s194, 256, %s196, %s183, 64, 64, 4
        $region28: #{tpu_custom_call.1} parent=23 // pred_fallthru
          _
      $region24: #{tpu_custom_call.1} parent=5 // pred_fallthru
        _
      %p202 = scmp.le.s32.totalorder 1, %s16
      %p203 = scmp.lt.s32.totalorder %s16, 3
      %p204 = pnand %p202, %p203
      %p205 = pneg %p204
      // Predicated region
      $region29: #{tpu_custom_call.1} parent=5 // pred_check
        _
      $region30: #{tpu_custom_call.1} parent=5 // pred_check_branch
        %207 = sbr.rel (%p204) target = $region32
      $region31: #{tpu_custom_call.1} parent=5 // pred_region
        %s208 = ssub.s32 %s16, 1
        %s209 = sand.u32 %s43, 1
        %s210 = scalar_lea.sflag [#allocation3], %s209
        %s211 = sand.u32 %s43, 1
        %s212 = smul.addr %s211, 16
        %s213 = scalar_lea.vmem [#allocation2], %s212
        // Predicated region
        $region33: #{tpu_custom_call.1} parent=31 // pred_check
          %p214 = pneg %p56
        $region34: #{tpu_custom_call.1} parent=31 // pred_check_branch
          %216 = sbr.rel (%p214) target = $region36
        $region35: #{tpu_custom_call.1} parent=31 // pred_region
          %217 = dma.done %s210, 256
        $region36: #{tpu_custom_call.1} parent=31 // pred_fallthru
          _
        // Predicated region
        $region37: #{tpu_custom_call.1} parent=31 // pred_check
          %p218 = pneg %p77
        $region38: #{tpu_custom_call.1} parent=31 // pred_check_branch
          %220 = sbr.rel (%p218) target = $region40
        $region39: #{tpu_custom_call.1} parent=31 // pred_region
          %221 = dma.done [#allocation6], 512
        $region40: #{tpu_custom_call.1} parent=31 // pred_fallthru
          _
        // Predicated region
        $region41: #{tpu_custom_call.1} parent=31 // pred_check
          %p222 = pneg %p103
        $region42: #{tpu_custom_call.1} parent=31 // pred_check_branch
          %224 = sbr.rel (%p222) target = $region44
        $region43: #{tpu_custom_call.1} parent=31 // pred_region
          %225 = dma.done [#allocation6], 512
        $region44: #{tpu_custom_call.1} parent=31 // pred_fallthru
          _
        %s226 = sand.u32 %s43, 1
        %s227 = scalar_lea.sflag [#allocation3], %s226
        %s228 = sand.u32 %s43, 1
        %s229 = smul.addr %s228, 16
        %s230 = scalar_lea.vmem [#allocation2], %s229
        %p231 = pneg %p56
        %p232 = pneg %p53
        %p233 = pneg %p77
        %p234 = pneg %p74
        %p235 = pneg %p103
        %p236 = pneg %p100
        %p237 = pneg %p131
        %p238 = pneg %p128
        %s239 = sand.u32 %s118, 1
        %s240 = scalar_lea.sflag [#allocation4], %s239
        %s241 = sand.u32 %s118, 1
        %s242 = smul.addr %s241, 32
        %s243 = scalar_lea.vmem [#allocation8], %s242
        %s244 = smul.u32 4, %s26
        %s245 = smul.u32 4, %s26
        %s246 = smul.u32 4, %s26
        %v248 = vld [vmem:[%s213] sm:$0xf]
        %v249 = vld [vmem:[%s213 + $0x4] sm:$0xf]
        %v250 = vld [vmem:[%s213 + $0x8] sm:$0xf]
        %v251 = vld [vmem:[%s213 + $0xc] sm:$0xf]
        %v252 = vld [vmem:[#allocation5] sm:$0xf]
        %v253 = vld [vmem:[#allocation5 + $0x4] sm:$0xf]
        %v254 = vld [vmem:[#allocation5 + $0x8] sm:$0xf]
        %v255 = vld [vmem:[#allocation5 + $0xc] sm:$0xf]
        %v256 = vld [vmem:[#allocation5 + $0x10] sm:$0xf]
        %v257 = vld [vmem:[#allocation5 + $0x14] sm:$0xf]
        %v258 = vld [vmem:[#allocation5 + $0x18] sm:$0xf]
        %v259 = vld [vmem:[#allocation5 + $0x1c] sm:$0xf]
        %v260 = vld [vmem:[#allocation7] sm:$0xff]
        %v261 = vld [vmem:[#allocation7 + $0x8] sm:$0xff]
        %v262 = vld [vmem:[#allocation7 + $0x10] sm:$0xff]
        %v263 = vld [vmem:[#allocation7 + $0x18] sm:$0xff]
        %v268 = vunpack.c.l.b16 %v248
        %v269 = vunpack.c.l.b16 %v249
        %v270 = vunpack.c.l.b16 %v250
        %v271 = vunpack.c.l.b16 %v251
        %v272 = vpack.c.b16 %v269, %v268
        %v273 = vpack.c.b16 %v271, %v270
        %v282 = vunpack.c.l.b16 %v252
        %v283 = vunpack.c.l.b16 %v253
        %v284 = vunpack.c.l.b16 %v254
        %v285 = vunpack.c.l.b16 %v255
        %v286 = vunpack.c.l.b16 %v256
        %v287 = vunpack.c.l.b16 %v257
        %v288 = vunpack.c.l.b16 %v258
        %v289 = vunpack.c.l.b16 %v259
        %v290 = vpack.c.b16 %v283, %v282
        %v291 = vpack.c.b16 %v285, %v284
        %v292 = vpack.c.b16 %v287, %v286
        %v293 = vpack.c.b16 %v289, %v288
        %vm298 = vcmask 523264
        %v300 = vsel %vm298, %v272, 0
        %v303 = vsel %vm298, %v273, 0
        %305 = vmatprep.subr.bf16.mxu0 0
        %306 = vmatpush1.bf16.msra.mxu0 0
        %307 = vmatprep.subr.bf16.mxu0 0
        %308 = vmatpush1.bf16.msra.mxu0 0
        %309 = vmatprep.subr.bf16.mxu0 0
        %310 = vmatpush1.bf16.msra.mxu0 0
        %311 = vmatprep.subr.bf16.mxu0 0
        %312 = vmatpush1.bf16.msra.mxu0 0
        %313 = vmatprep.subr.bf16.mxu0 0
        %314 = vmatpush1.bf16.msra.mxu0 %v293
        %315 = vmatprep.subr.bf16.mxu0 0
        %316 = vmatpush1.bf16.msra.mxu0 %v292
        %317 = vmatprep.subr.bf16.mxu0 0
        %318 = vmatpush1.bf16.msra.mxu0 %v291
        %319 = vmatprep.subr.bf16.mxu0 0
        %320 = vmatpush1.bf16.msra.mxu0 %v290
        %321 = vmatprep.subr.bf16.mxu0 0
        %322 = vmatpush2.bf16.msra.mxu0 0
        %323 = vmatprep.subr.bf16.mxu0 0
        %324 = vmatpush2.bf16.msra.mxu0 0
        %325 = vmatprep.subr.bf16.mxu0 0
        %326 = vmatpush2.bf16.msra.mxu0 0
        %327 = vmatprep.subr.bf16.mxu0 0
        %328 = vmatpush2.bf16.msra.mxu0 0
        %329 = vmatprep.subr.bf16.mxu0 0
        %330 = vmatpush2.bf16.msra.mxu0 0
        %331 = vmatprep.subr.bf16.mxu0 0
        %332 = vmatpush2.bf16.msra.mxu0 0
        %333 = vmatprep.subr.bf16.mxu0 0
        %334 = vmatpush2.bf16.msra.mxu0 0
        %335 = vmatprep.subr.bf16.mxu0 0
        %336 = vmatpush2.bf16.msra.mxu0 0
        %337 = vmatprep.mubr.bf16.mxu0 0
        %338 = vmatmul.mubr.bf16.gmra.mxu0 %v300
        %v339 = vpop.f32.mrf.mxu0
        %v340 = vadd.f32 %v260, %v339
        %v341 = vpop.f32.mrf.mxu0
        %v342 = vpop.f32.mrf.mxu0
        %v343 = vadd.f32 %v261, %v342
        %v344 = vpop.f32.mrf.mxu0
        %345 = vmatprep.mubr.bf16.mxu0 0
        %346 = vmatmul.mubr.bf16.gmra.mxu0 %v303
        %v347 = vpop.f32.mrf.mxu0
        %v348 = vadd.f32 %v262, %v347
        %v349 = vpop.f32.mrf.mxu0
        %v350 = vpop.f32.mrf.mxu0
        %v351 = vadd.f32 %v263, %v350
        %v352 = vpop.f32.mrf.mxu0
        %353 = vdwg.mxu0
        %354 = vst [vmem:[%s243] sm:$0xff] %v340
        %355 = vst [vmem:[%s243 + $0x8] sm:$0xff] %v343
        %356 = vst [vmem:[%s243 + $0x10] sm:$0xff] %v348
        %357 = vst [vmem:[%s243 + $0x18] sm:$0xff] %v351
        %s358 = sand.u32 %s118, 1
        %s359 = scalar_lea.sflag [#allocation4], %s358
        %s360 = sand.u32 %s118, 1
        %s361 = smul.addr %s360, 32
        %s362 = scalar_lea.vmem [#allocation8], %s361
        // Predicated region
        $region45: #{tpu_custom_call.1} parent=31 // pred_check
          %p363 = pneg %p128
        $region46: #{tpu_custom_call.1} parent=31 // pred_check_branch
          %365 = sbr.rel (%p363) target = $region48
        $region47: #{tpu_custom_call.1} parent=31 // pred_region
          %s366 = smul.u32 4, %s26
          %s368 = ssub.s32 512, 512
          %369 = vsyncadd %s359, %s368
          %s370 = smul.addr %s25, 4
          %s371 = sadd.s32 %s366, %s370
          %s372 = smul.addr %s371, 128
          %s373 = scalar_lea.hbm %s3, %s372
          %s374 = sshll.u32 %s362, 4
          %s375 = int_to_ptr.vmem [resolvable:$true] %s374
          %380 = dma.vmem_to_hbm [thread:$0]  %s375, 512, %s373, %s359, 128, 128, 8
        $region48: #{tpu_custom_call.1} parent=31 // pred_fallthru
          _
      $region32: #{tpu_custom_call.1} parent=5 // pred_fallthru
        _
      %p381 = scmp.le.s32.totalorder 2, %s16
      // Predicated region
      $region49: #{tpu_custom_call.1} parent=5 // pred_check
        %p382 = pneg %p381
      $region50: #{tpu_custom_call.1} parent=5 // pred_check_branch
        %384 = sbr.rel (%p382) target = $region52
      $region51: #{tpu_custom_call.1} parent=5 // pred_region
        %s385 = ssub.s32 %s16, 2
        // Predicated region
        $region53: #{tpu_custom_call.1} parent=51 // pred_check
          %p386 = pneg %p134
        $region54: #{tpu_custom_call.1} parent=51 // pred_check_branch
          %388 = sbr.rel (%p386) target = $region56
        $region55: #{tpu_custom_call.1} parent=51 // pred_region
          %s389 = sand.u32 %s119, 1
          %s390 = scalar_lea.sflag [#allocation4], %s389
          %s391 = sand.u32 %s119, 1
          %s392 = smul.addr %s391, 32
          %s393 = scalar_lea.vmem [#allocation8], %s392
          %394 = dma.done %s390, 512
        $region56: #{tpu_custom_call.1} parent=51 // pred_fallthru
          _
      $region52: #{tpu_custom_call.1} parent=5 // pred_fallthru
        _
    $region6: #{tpu_custom_call.1} parent=1 // loop_footer
      %s20 = sadd.s32 1, %s16
    $region7: #{tpu_custom_call.1} parent=1 // loop_footer_branch
      %15 = sbr.rel target = $region3
    $region8: #{tpu_custom_call.1} parent=1 // loop_exit
      _
    %395 = vsyncpa [#allocation3], 1
    %s396 = scalar_lea.sflag [#allocation3], 1
    %397 = vsyncpa %s396, 1
    %398 = vsyncpa [#allocation6], 1
    %399 = vsyncpa [#allocation4], 1
    %s400 = scalar_lea.sflag [#allocation4], 1
    %401 = vsyncpa %s400, 1

</llo_original>
